<compile_context>
chip_gen: v6e
topology: v6e:2x2x1
jax: 0.10.0
libtpu: 0.0.40
codegen_flags: <defaults>
</compile_context>

<pallas_src>
import functools
import math

import jax
import jax.numpy as jnp
from jax.experimental import pallas as pl
from jax.experimental.pallas import tpu as pltpu


def _pos_enc_kernel(freq_ref, phase_ref, x_ref, o_ref, *, batch, tile_rows):
    """One (tile_rows, d_model) tile of the flat (S*B, d_model) array.

    Flat row r maps to sequence position r // batch.  The sinusoid is built from
    rank-1 factors:  pe[r, c] = sin(pos[r] * freq[c] + phase[c]),  where cos
    columns are a +pi/2 phase of sin -> a single transcendental per element.
    """
    row0 = pl.program_id(0) * tile_rows                            # scalar (sreg)
    local = jax.lax.broadcasted_iota(jnp.int32, (tile_rows, 1), 0)
    rows = local + row0                                            # (tile_rows, 1)

    # sequence position = flat_row // batch (non-negative), column-only work.
    if batch == 1:
        pos_i = rows
    elif (batch & (batch - 1)) == 0:                               # power of two
        pos_i = rows >> (batch.bit_length() - 1)
    else:
        pos_i = jax.lax.div(rows, jnp.full_like(rows, batch))
    pos = pos_i.astype(jnp.float32)                                # (tile_rows, 1)

    # (tile_rows,1) * (1,D) + (1,D)  ->  (tile_rows, D); one sin per element.
    angle = pos * freq_ref[...] + phase_ref[...]
    pe = jnp.sin(angle)
    o_ref[...] = (x_ref[...].astype(jnp.float32) + pe).astype(o_ref.dtype)


def _freq_phase(d_model, dtype=jnp.float32):
    """Grid-invariant rank-1 factors: freq[c] = exp(2*(c//2) * -ln(1e4)/d),
    phase[c] = (c odd) * pi/2  (so sin(angle+phase) reproduces the sin/cos
    interleave of the PyTorch buffer, including the odd-d_model truncation)."""
    c = jnp.arange(d_model, dtype=jnp.int32)
    even = (c - (c & 1)).astype(jnp.float32)
    freq = jnp.exp(even * (-math.log(10000.0) / d_model))
    phase = (c & 1).astype(jnp.float32) * (math.pi / 2.0)
    return freq[None, :].astype(dtype), phase[None, :].astype(dtype)


def _tile_caps():
    """(per-buffer tile bytes, vmem_limit_bytes) per chip generation.

    v5e/v6e have 128 MiB VMEM (default scoped limit 16/32 MiB, so the explicit
    limit matters); v7x and unknown chips get the conservative 64-MiB-safe pick.
    """
    try:
        kind = jax.devices()[0].device_kind.lower()
    except Exception:  # pragma: no cover - defensive
        kind = ""
    if "v5" in kind or "v6" in kind:
        return 8 << 20, 64 << 20
    return 4 << 20, 32 << 20


def _choose_tile_rows(total_rows, d, dtype_bytes, max_tile_bytes, min_tiles=4):
    """Rows per tile: multiple of 8 (sublane), capped per-buffer bytes, and for
    large inputs capped so the 'parallel' grid has >= min_tiles tiles (both v7x
    TensorCores busy).  Tiny inputs keep a single tile (per-step overhead)."""
    cap = max(8, (max_tile_bytes // max(d * dtype_bytes, 1)) // 8 * 8)
    rows = min(pl.cdiv(total_rows, 8) * 8, cap)
    split = (total_rows // min_tiles) // 8 * 8
    if split >= 128:
        rows = min(rows, split)
    return max(rows, 8)


def positional_encoding(x, *, tile_rows=None):
    """x: (S, B, D) -> x + pe[:S] broadcast over batch (eval-mode dropout = identity).

    NOTE: the flattened x is donated into the output (input_output_aliases); do
    not rely on in-place behavior if the caller keeps other live uses of x.
    """
    S, B, D = x.shape
    R = S * B

    tile_bytes, vmem_limit = _tile_caps()
    if tile_rows is None:
        tile_rows = _choose_tile_rows(R, D, x.dtype.itemsize, tile_bytes)
    else:
        tile_rows = max(8, (int(tile_rows) // 8) * 8)              # sublane-aligned
        tile_rows = min(tile_rows, pl.cdiv(R, 8) * 8)
    grid = (pl.cdiv(R, tile_rows),)                                # ragged last tile masked

    x_flat = x.reshape(R, D)                                       # contiguous (S,B)->rows
    freq, phase = _freq_phase(D)                                   # (1, D) each, resident

    kernel = functools.partial(_pos_enc_kernel, batch=B, tile_rows=tile_rows)

    out_flat = pl.pallas_call(
        kernel,
        out_shape=jax.ShapeDtypeStruct((R, D), x.dtype),
        grid_spec=pl.GridSpec(
            grid=grid,
            in_specs=[
                pl.BlockSpec((1, D), lambda i: (0, 0)),            # freq: resident
                pl.BlockSpec((1, D), lambda i: (0, 0)),            # phase: resident
                pl.BlockSpec((tile_rows, D), lambda i: (i, 0)),    # x: streamed
            ],
            out_specs=pl.BlockSpec((tile_rows, D), lambda i: (i, 0)),
        ),
        compiler_params=pltpu.CompilerParams(
            dimension_semantics=("parallel",),                     # split across TCs on v7x
            vmem_limit_bytes=vmem_limit,
        ),
        input_output_aliases={2: 0},                               # donate x_flat into output
    )(freq, phase, x_flat)

    return out_flat.reshape(S, B, D)


def make_pe_table(d_model, max_len=5000, dtype=jnp.float32):
    """Pure-JAX sinusoidal table, exactly like the PyTorch __init__ (reference only)."""
    d_pad = d_model + 1 if (d_model % 2 != 0) else d_model
    pe = jnp.zeros((max_len, d_pad), dtype=jnp.float32)
    position = jnp.arange(0, max_len, dtype=jnp.float32)[:, None]
    div_term = jnp.exp(jnp.arange(0, d_model, 2, dtype=jnp.float32)
                       * (-math.log(10000.0) / d_model))
    args = position * div_term
    pe = pe.at[:, 0::2].set(jnp.sin(args))
    pe = pe.at[:, 1::2].set(jnp.cos(args))
    if d_model % 2 != 0:
        pe = pe[:, :-1]
    return pe.astype(dtype)


if __name__ == "__main__":
    key = jax.random.PRNGKey(0)
    k1, k2 = jax.random.split(key)

    # Main check: lane-dense d_model (multiple of 128), seq-first layout (S, B, D).
    S, B, D = 8, 2, 128
    x = jax.random.normal(k1, (S, B, D), dtype=jnp.float32)
    ref = x + make_pe_table(D, max_len=64)[:S][:, None, :]        # before the call (donation)
    out = jax.block_until_ready(positional_encoding(x))
    assert out.shape == (S, B, D)
    assert jnp.allclose(out, ref, atol=1e-4, rtol=1e-4), "mismatch vs reference (lane-dense)"

    # Second check: multi-tile grid, ragged last tile, batch not a power of two,
    # d_model < 128 (masked-lane store path).
    S2, B2, D2 = 50, 3, 32
    x2 = jax.random.normal(k2, (S2, B2, D2), dtype=jnp.float32)
    ref2 = x2 + make_pe_table(D2, max_len=128)[:S2][:, None, :]
    out2 = jax.block_until_ready(positional_encoding(x2, tile_rows=64))
    assert jnp.allclose(out2, ref2, atol=1e-4, rtol=1e-4), "mismatch vs reference (tiled/ragged)"

    print("KERNEL_OK")
</pallas_src>

<mosaic_0001>
module attributes {stable_mosaic.version = 11 : i64} {
  func.func @_pos_enc_kernel(%arg0: i32, %arg1: memref<1x128xf32, #tpu.memory_space<vmem>>, %arg2: memref<1x128xf32, #tpu.memory_space<vmem>>, %arg3: memref<16x128xf32, #tpu.memory_space<vmem>>, %arg4: memref<16x128xf32, #tpu.memory_space<vmem>>) attributes {dimension_semantics = [#tpu.dimension_semantics<parallel>], iteration_bounds = array<i64: 1>, scalar_prefetch = 0 : i64, scratch_operands = 0 : i64, tpu.core_type = #tpu.core_type<tc>, window_params = [{pipeline_mode = #tpu.pipeline_mode<synchronous>, transform_indices = @transform_0, window_bounds = array<i64: 1, 128>}, {pipeline_mode = #tpu.pipeline_mode<synchronous>, transform_indices = @transform_1, window_bounds = array<i64: 1, 128>}, {transform_indices = @transform_2, window_bounds = array<i64: 16, 128>}, {transform_indices = @transform_3, window_bounds = array<i64: 16, 128>}]} {
    %c16_i32 = arith.constant 16 : i32
    %0 = arith.muli %arg0, %c16_i32 : i32
    %1 = tpu.iota {dimensions = array<i32: 0>} : vector<16x1xi32>
    %2 = vector.broadcast %0 : i32 to vector<16x1xi32>
    %3 = arith.addi %1, %2 : vector<16x1xi32>
    %c1_i32 = arith.constant 1 : i32
    %4 = vector.broadcast %c1_i32 : i32 to vector<16x1xi32>
    %5 = arith.shrsi %3, %4 : vector<16x1xi32>
    %6 = arith.sitofp %5 : vector<16x1xi32> to vector<16x1xf32>
    %c0 = arith.constant 0 : index
    %c0_0 = arith.constant 0 : index
    %7 = vector.load %arg1[%c0, %c0_0] : memref<1x128xf32, #tpu.memory_space<vmem>>, vector<1x128xf32>
    %8 = vector.broadcast %6 : vector<16x1xf32> to vector<16x128xf32>
    %9 = vector.broadcast %7 : vector<1x128xf32> to vector<16x128xf32>
    %10 = arith.mulf %8, %9 : vector<16x128xf32>
    %c0_1 = arith.constant 0 : index
    %c0_2 = arith.constant 0 : index
    %11 = vector.load %arg2[%c0_1, %c0_2] : memref<1x128xf32, #tpu.memory_space<vmem>>, vector<1x128xf32>
    %12 = vector.broadcast %11 : vector<1x128xf32> to vector<16x128xf32>
    %13 = arith.addf %10, %12 : vector<16x128xf32>
    %14 = math.sin %13 : vector<16x128xf32>
    %c0_3 = arith.constant 0 : index
    %c0_4 = arith.constant 0 : index
    %15 = vector.load %arg3[%c0_3, %c0_4] : memref<16x128xf32, #tpu.memory_space<vmem>>, vector<16x128xf32>
    %16 = arith.addf %15, %14 : vector<16x128xf32>
    %c0_5 = arith.constant 0 : index
    %c0_6 = arith.constant 0 : index
    %17 = vector.load %arg4[%c0_5, %c0_6] : memref<16x128xf32, #tpu.memory_space<vmem>>, vector<16x128xf32>
    tpu.vector_store %arg4[%c0_5, %c0_6], %16 {strides = array<i32>} : memref<16x128xf32, #tpu.memory_space<vmem>>, vector<16x128xf32>,
    return
  }
  func.func @transform_0(%arg0: i32) -> (i32, i32) {
    %c0_i32 = arith.constant 0 : i32
    %c0_i32_0 = arith.constant 0 : i32
    %c0_i32_1 = arith.constant 0 : i32
    return %c0_i32, %c0_i32_0 : i32, i32
  }
  func.func @transform_1(%arg0: i32) -> (i32, i32) {
    %c0_i32 = arith.constant 0 : i32
    %c0_i32_0 = arith.constant 0 : i32
    %c0_i32_1 = arith.constant 0 : i32
    return %c0_i32, %c0_i32_0 : i32, i32
  }
  func.func @transform_2(%arg0: i32) -> (i32, i32) {
    %c0_i32 = arith.constant 0 : i32
    %c0_i32_0 = arith.constant 0 : i32
    return %arg0, %c0_i32 : i32, i32
  }
  func.func @transform_3(%arg0: i32) -> (i32, i32) {
    %c0_i32 = arith.constant 0 : i32
    %c0_i32_0 = arith.constant 0 : i32
    return %arg0, %c0_i32 : i32, i32
  }
}

</mosaic_0001>

<llo_original>
// kernel: tpu_custom_call.1
$region0: #{tpu_custom_call.1}
  #allocation0 [shape = 'u32[]', space=smem, size = 0x4, offset = 0x4, fixed_abs, tag = 'smem constant byte address 0x4 - core index']
  #allocation1 [shape = 'u32[144,128]{1,0:T(1,128)}', space=vmem, size = 0x12000, scoped, tag = 'internal scratch']
  %s0 = inlined_call_operand.vmem [shape: f32[1,128], index: 0, kind: input, shape index: {}]
  %s1 = inlined_call_operand.vmem [shape: f32[1,128], index: 1, kind: input, shape index: {}]
  %s2 = inlined_call_operand.hbm [shape: f32[16,128], index: 2, kind: input, shape index: {}, may-alias: {2,3}]
  %s3 = inlined_call_operand.hbm [shape: f32[16,128], index: 3, kind: output, shape index: {}, may-alias: {2,3}]
  %s4 = sld [smem:[#allocation0]]
  $region26: #{tpu_custom_call.1} parent=0
    _
  %s6 = ssub.s32 1, %s4
  %s7 = scalar_select 0, %s6, %s4
  $region1: #{tpu_custom_call.1} parent=0
    #allocation2 [shape = 'u8[8192]{0}', space=vmem, size = 0x2000, scoped, tag = 'input window, operand 2, single buffered']
    #allocation3 [shape = 's32[1]{0}', space=sflag, size = 0x4, scoped, tag = 'scoped memory for tpu_custom_call.1']
    #allocation4 [shape = 's32[1]{0}', space=sflag, size = 0x4, scoped, tag = 'scoped memory for tpu_custom_call.1']
    #allocation5 [shape = 'u8[8192]{0}', space=vmem, size = 0x2000, scoped, tag = 'output window, operand 0, single buffered']
    %8 = vsyncpa [#allocation3], 0
    %9 = vsyncpa [#allocation4], 0
    // Predicated region
    $region2: #{tpu_custom_call.1} parent=1 // pred_check
      _
    $region3: #{tpu_custom_call.1} parent=1 // pred_check_branch
      %11 = sbr.rel (0) target = $region5
    $region4: #{tpu_custom_call.1} parent=1 // pred_region
      _
    $region5: #{tpu_custom_call.1} parent=1 // pred_fallthru
      _
    // Predicated region
    $region6: #{tpu_custom_call.1} parent=1 // pred_check
      _
    $region7: #{tpu_custom_call.1} parent=1 // pred_check_branch
      %13 = sbr.rel (0) target = $region9
    $region8: #{tpu_custom_call.1} parent=1 // pred_region
      _
    $region9: #{tpu_custom_call.1} parent=1 // pred_fallthru
      _
    // Predicated region
    $region10: #{tpu_custom_call.1} parent=1 // pred_check
      _
    $region11: #{tpu_custom_call.1} parent=1 // pred_check_branch
      %15 = sbr.rel (0) target = $region13
    $region12: #{tpu_custom_call.1} parent=1 // pred_region
      %s17 = ssub.s32 256, 256
      %18 = vsyncadd [#allocation3], %s17
      %s19 = sshll.u32 [#allocation2], 4
      %s20 = int_to_ptr.vmem [resolvable:$true] %s19
      %25 = dma.hbm_to_vmem [thread:$0]  %s2, 256, %s20, [#allocation3], 128, 128, 8
    $region13: #{tpu_custom_call.1} parent=1 // pred_fallthru
      _
    // Predicated region
    $region14: #{tpu_custom_call.1} parent=1 // pred_check
      _
    $region15: #{tpu_custom_call.1} parent=1 // pred_check_branch
      %27 = sbr.rel (0) target = $region17
    $region16: #{tpu_custom_call.1} parent=1 // pred_region
      %28 = dma.done [#allocation3], 256
    $region17: #{tpu_custom_call.1} parent=1 // pred_fallthru
      _
    %s29 = smul.u32 0, 16
    %v30 = vlaneseq
    %v31 = vshrl.u32 %v30, 7
    %v32 = vadd.s32 %v31, 8
    %v33 = vstv %s29
    %v34 = vadd.s32 %v31, %v33
    %v35 = vadd.s32 %v32, %v33
    %v36 = vshra.s32 %v34, 1
    %v37 = vshra.s32 %v35, 1
    %v38 = vcvt.s32.f32 %v36
    %v39 = vcvt.s32.f32 %v37
    %v40 = vld [vmem:[%s0] sm:$0x1]
    %v42 = vlaneseq
    %v43 = vshrl.u32 %v42, 7
    %v44 = vsub.s32 0, %v43
    %v45 = vrot.slane %v40, %v44
    %v47 = vmul.f32 %v38, %v45
    %v48 = vmul.f32 %v39, %v45
    %v49 = vld [vmem:[%s1] sm:$0x1]
    %v51 = vlaneseq
    %v52 = vshrl.u32 %v51, 7
    %v53 = vsub.s32 0, %v52
    %v54 = vrot.slane %v49, %v53
    %v56 = vadd.f32 %v47, %v54
    %v57 = vadd.f32 %v48, %v54
    %v58 = vand.u32 2147483647, %v56
    %vm59 = vcmp.le.f32.partialorder %v58, 0.7853982
    %vm60 = vcmp.lt.s32.totalorder %v56, 0
    %v61 = vand.u32 %v56, 2139095040
    %v62 = vshrl.u32 %v61, 23
    %v63 = vsub.s32 %v62, 127
    %v64 = vand.u32 2147483647, %v56
    %v65 = vand.u32 %v64, 8388607
    %v66 = vor.u32 %v65, 8388608
    %v67 = vsub.s32 0, %v66
    %v68 = vadd.s32 %v63, 1
    %vm69 = vcmp.gt.s32.totalorder %v68, 0
    %v70 = vsel %vm69, %v68, 0
    %v71 = vshrl.u32 %v70, 5
    %v72 = vand.u32 %v70, 31
    %v73 = vsub.s32 32, %v72
    %v74 = vshrl.u32 683565275, %v73
    %v75 = vshll.u32 683565275, %v72
    %v76 = vshrl.u32 2475754826, %v73
    %v77 = vor.u32 %v75, %v76
    %v78 = vshll.u32 2475754826, %v72
    %v79 = vshrl.u32 2131351028, %v73
    %v80 = vor.u32 %v78, %v79
    %v81 = vshll.u32 2131351028, %v72
    %v82 = vshrl.u32 2102212464, %v73
    %v83 = vor.u32 %v81, %v82
    %v84 = vshll.u32 2102212464, %v72
    %v85 = vshrl.u32 920167782, %v73
    %v86 = vor.u32 %v84, %v85
    %v87 = vshll.u32 920167782, %v72
    %v88 = vshrl.u32 1326507024, %v73
    %v89 = vor.u32 %v87, %v88
    %vm90 = vcmp.lt.s32.totalorder %v71, 1
    %vm91 = vcmp.lt.s32.totalorder %v71, 2
    %vm92 = vcmp.lt.s32.totalorder %v71, 3
    %vm93 = vcmp.lt.s32.totalorder %v71, 4
    %v94 = vsel %vm90, %v74, %v77
    %v95 = vsel %vm93, %v83, 2102212464
    %v96 = vsel %vm92, %v80, %v95
    %v97 = vsel %vm91, %v94, %v96
    %v98 = vsel %vm90, %v77, %v80
    %v99 = vsel %vm93, %v86, 920167782
    %v100 = vsel %vm92, %v83, %v99
    %v101 = vsel %vm91, %v98, %v100
    %v102 = vsel %vm90, %v80, %v83
    %v103 = vsel %vm93, %v89, 1326507024
    %v104 = vsel %vm92, %v86, %v103
    %v105 = vsel %vm91, %v102, %v104
    %v106 = vshll.u32 %v66, 8
    %v107 = vmul.u32.u64.compose %v106, %v105
    %v108 = vextract.low.u32 %v107
    %v109 = vextract.high.u32 %v107
    %v110 = vmul.u32.u64.compose %v106, %v101
    %v111 = vextract.low.u32 %v110
    %v112 = vextract.high.u32 %v110
    %v113 = vmul.u32 %v106, %v97
    %v114 = vadd.s32 %v109, %v111
    %vm115 = vc.u32 %v109, %v111
    %v116 = vadd.s32 %v112, 1
    %v117 = vsel %vm115, %v116, %v112
    %v118 = vadd.s32 %v113, %v117
    %v119 = vadd.s32 %v118, 536870912
    %v120 = vshrl.u32 %v119, 30
    %v121 = vshll.u32 %v120, 30
    %v122 = vsub.s32 %v118, %v121
    %vm123 = vcmp.lt.s32.totalorder %v122, 0
    %v124 = vsub.s32 0, %v122
    %v125 = vsel %vm123, %v124, %v122
    %v126 = vclz %v125
    %v127 = vsub.s32 %v126, 2
    %vm128 = vcmp.gt.s32.totalorder 0, %v127
    %v129 = vsel %vm128, 0, %v127
    %v130 = vsub.s32 32, %v129
    %v131 = vshll.u32 %v122, %v129
    %v132 = vshrl.u32 %v114, %v130
    %v133 = vor.u32 %v131, %v132
    %v134 = vsub.s32 4294967266, %v129
    %v135 = vadd.s32 %v134, 127
    %v136 = vshll.u32 %v135, 23
    %v137 = vor.u32 4788187, %v136
    %v138 = vand.u32 2147483647, %v137
    %v140 = vcvt.s32.f32 %v133
    %v141 = vmul.f32 %v140, %v138
    %v142 = vxor.u32 %v141, 2147483648
    %v143 = vsel %vm60, %v142, %v141
    %v144 = vsub.s32 4, %v120
    %v145 = vsel %vm60, %v144, %v120
    %v146 = vsel %vm59, %v56, %v143
    %v147 = vsel %vm59, 0, %v145
    %v148 = vcosq.f32.pop %v146
    %v149 = vsinq.f32.pop %v146
    %vm150 = vweird.f32 %v56
    %v151 = vadd.s32 %v147, 3
    %v152 = vand.u32 %v151, 3
    %vm153 = vcmp.lt.s32.totalorder %v152, 2
    %vm154 = vcmp.eq.s32.totalorder %v152, 0
    %v155 = vxor.u32 %v149, 2147483648
    %v156 = vsel %vm154, %v148, %v155
    %vm157 = vcmp.eq.s32.totalorder %v152, 2
    %v158 = vxor.u32 %v148, 2147483648
    %v159 = vsel %vm157, %v158, %v149
    %v160 = vsel %vm153, %v156, %v159
    %v161 = vsel %vm150, nan, %v160
    %v162 = vand.u32 2147483647, %v57
    %vm163 = vcmp.le.f32.partialorder %v162, 0.7853982
    %vm164 = vcmp.lt.s32.totalorder %v57, 0
    %v165 = vand.u32 %v57, 2139095040
    %v166 = vshrl.u32 %v165, 23
    %v167 = vsub.s32 %v166, 127
    %v168 = vand.u32 2147483647, %v57
    %v169 = vand.u32 %v168, 8388607
    %v170 = vor.u32 %v169, 8388608
    %v171 = vsub.s32 0, %v170
    %v172 = vadd.s32 %v167, 1
    %vm173 = vcmp.gt.s32.totalorder %v172, 0
    %v174 = vsel %vm173, %v172, 0
    %v175 = vshrl.u32 %v174, 5
    %v176 = vand.u32 %v174, 31
    %v177 = vsub.s32 32, %v176
    %v178 = vshrl.u32 683565275, %v177
    %v179 = vshll.u32 683565275, %v176
    %v180 = vshrl.u32 2475754826, %v177
    %v181 = vor.u32 %v179, %v180
    %v182 = vshll.u32 2475754826, %v176
    %v183 = vshrl.u32 2131351028, %v177
    %v184 = vor.u32 %v182, %v183
    %v185 = vshll.u32 2131351028, %v176
    %v186 = vshrl.u32 2102212464, %v177
    %v187 = vor.u32 %v185, %v186
    %v188 = vshll.u32 2102212464, %v176
    %v189 = vshrl.u32 920167782, %v177
    %v190 = vor.u32 %v188, %v189
    %v191 = vshll.u32 920167782, %v176
    %v192 = vshrl.u32 1326507024, %v177
    %v193 = vor.u32 %v191, %v192
    %vm194 = vcmp.lt.s32.totalorder %v175, 1
    %vm195 = vcmp.lt.s32.totalorder %v175, 2
    %vm196 = vcmp.lt.s32.totalorder %v175, 3
    %vm197 = vcmp.lt.s32.totalorder %v175, 4
    %v198 = vsel %vm194, %v178, %v181
    %v199 = vsel %vm197, %v187, 2102212464
    %v200 = vsel %vm196, %v184, %v199
    %v201 = vsel %vm195, %v198, %v200
    %v202 = vsel %vm194, %v181, %v184
    %v203 = vsel %vm197, %v190, 920167782
    %v204 = vsel %vm196, %v187, %v203
    %v205 = vsel %vm195, %v202, %v204
    %v206 = vsel %vm194, %v184, %v187
    %v207 = vsel %vm197, %v193, 1326507024
    %v208 = vsel %vm196, %v190, %v207
    %v209 = vsel %vm195, %v206, %v208
    %v210 = vshll.u32 %v170, 8
    %v211 = vmul.u32.u64.compose %v210, %v209
    %v212 = vextract.low.u32 %v211
    %v213 = vextract.high.u32 %v211
    %v214 = vmul.u32.u64.compose %v210, %v205
    %v215 = vextract.low.u32 %v214
    %v216 = vextract.high.u32 %v214
    %v217 = vmul.u32 %v210, %v201
    %v218 = vadd.s32 %v213, %v215
    %vm219 = vc.u32 %v213, %v215
    %v220 = vadd.s32 %v216, 1
    %v221 = vsel %vm219, %v220, %v216
    %v222 = vadd.s32 %v217, %v221
    %v223 = vadd.s32 %v222, 536870912
    %v224 = vshrl.u32 %v223, 30
    %v225 = vshll.u32 %v224, 30
    %v226 = vsub.s32 %v222, %v225
    %vm227 = vcmp.lt.s32.totalorder %v226, 0
    %v228 = vsub.s32 0, %v226
    %v229 = vsel %vm227, %v228, %v226
    %v230 = vclz %v229
    %v231 = vsub.s32 %v230, 2
    %vm232 = vcmp.gt.s32.totalorder 0, %v231
    %v233 = vsel %vm232, 0, %v231
    %v234 = vsub.s32 32, %v233
    %v235 = vshll.u32 %v226, %v233
    %v236 = vshrl.u32 %v218, %v234
    %v237 = vor.u32 %v235, %v236
    %v238 = vsub.s32 4294967266, %v233
    %v239 = vadd.s32 %v238, 127
    %v240 = vshll.u32 %v239, 23
    %v241 = vor.u32 4788187, %v240
    %v242 = vand.u32 2147483647, %v241
    %v244 = vcvt.s32.f32 %v237
    %v245 = vmul.f32 %v244, %v242
    %v246 = vxor.u32 %v245, 2147483648
    %v247 = vsel %vm164, %v246, %v245
    %v248 = vsub.s32 4, %v224
    %v249 = vsel %vm164, %v248, %v224
    %v250 = vsel %vm163, %v57, %v247
    %v251 = vsel %vm163, 0, %v249
    %v252 = vcosq.f32.pop %v250
    %v253 = vsinq.f32.pop %v250
    %vm254 = vweird.f32 %v57
    %v255 = vadd.s32 %v251, 3
    %v256 = vand.u32 %v255, 3
    %vm257 = vcmp.lt.s32.totalorder %v256, 2
    %vm258 = vcmp.eq.s32.totalorder %v256, 0
    %v259 = vxor.u32 %v253, 2147483648
    %v260 = vsel %vm258, %v252, %v259
    %vm261 = vcmp.eq.s32.totalorder %v256, 2
    %v262 = vxor.u32 %v252, 2147483648
    %v263 = vsel %vm261, %v262, %v253
    %v264 = vsel %vm257, %v260, %v263
    %v265 = vsel %vm254, nan, %v264
    %v266 = vld [vmem:[#allocation2] sm:$0xff]
    %v267 = vld [vmem:[#allocation2 + $0x8] sm:$0xff]
    %v268 = vadd.f32 %v266, %v161
    %v269 = vadd.f32 %v267, %v265
    %270 = vst [vmem:[#allocation5] sm:$0xff] %v268
    %271 = vst [vmem:[#allocation5 + $0x8] sm:$0xff] %v269
    // Predicated region
    $region18: #{tpu_custom_call.1} parent=1 // pred_check
      _
    $region19: #{tpu_custom_call.1} parent=1 // pred_check_branch
      %273 = sbr.rel (0) target = $region21
    $region20: #{tpu_custom_call.1} parent=1 // pred_region
      %s275 = ssub.s32 256, 256
      %276 = vsyncadd [#allocation4], %s275
      %s277 = sshll.u32 [#allocation5], 4
      %s278 = int_to_ptr.vmem [resolvable:$true] %s277
      %283 = dma.vmem_to_hbm [thread:$0]  %s278, 256, %s3, [#allocation4], 128, 128, 8
    $region21: #{tpu_custom_call.1} parent=1 // pred_fallthru
      _
    // Predicated region
    $region22: #{tpu_custom_call.1} parent=1 // pred_check
      _
    $region23: #{tpu_custom_call.1} parent=1 // pred_check_branch
      %285 = sbr.rel (0) target = $region25
    $region24: #{tpu_custom_call.1} parent=1 // pred_region
      %286 = dma.done [#allocation4], 256
    $region25: #{tpu_custom_call.1} parent=1 // pred_fallthru
      _
    %287 = vsyncpa [#allocation3], 1
    %288 = vsyncpa [#allocation4], 1

</llo_original>
